<compile_context>
chip_gen: v7x
topology: tpu7x:2x2x1
jax: 0.10.0
libtpu: 0.0.40
codegen_flags: <defaults>
</compile_context>

<pallas_src>
import functools
import math

import jax
import jax.numpy as jnp
from jax import lax
from jax.experimental import pallas as pl
from jax.experimental.pallas import tpu as pltpu


# Large-negative finite mask value (avoids -inf - -inf = NaN corner cases).
MASK_VALUE = -0.7 * float(jnp.finfo(jnp.float32).max)


def _pick_block(dim, target):
    """Largest block <= target that evenly divides `dim` (falls back to `dim`)."""
    if dim <= target:
        return dim
    for blk in (1024, 512, 256, 128, 64, 32, 16, 8):
        if blk <= target and dim % blk == 0:
            return blk
    return dim  # ragged: untiled fallback


# --------------------------------------------------------------------------- #
# Kernel 1: fused QKV projection
# --------------------------------------------------------------------------- #
def _qkv_proj_kernel(x_ref, w_ref, qkv_ref):
    # x_ref: (1, tb, d_in) in the input's native dtype; w_ref: (d_in, 3*dp).
    # Cast to the compute dtype in-kernel (rides a VPU slot) instead of paying a
    # separate XLA cast pass over x in HBM.
    x = x_ref[0].astype(w_ref.dtype)
    qkv = jnp.dot(x, w_ref[...], preferred_element_type=jnp.float32)
    qkv_ref[0] = qkv.astype(qkv_ref.dtype)


# --------------------------------------------------------------------------- #
# Kernel 2: flash-style causal attention
# --------------------------------------------------------------------------- #
def _flash_attn_kernel(q_ref, k_ref, v_ref, o_ref, m_scr, l_scr, acc_scr,
                       *, tq, tk, approx_recip):
    qi = pl.program_id(1)
    ki = pl.program_id(2)

    @pl.when(ki == 0)
    def _init():
        m_scr[...] = jnp.full(m_scr.shape, MASK_VALUE, dtype=m_scr.dtype)
        l_scr[...] = jnp.zeros_like(l_scr)
        acc_scr[...] = jnp.zeros_like(acc_scr)

    def _scores():
        # Q @ K^T without an explicit transpose: contract both last dims.
        q = q_ref[0]                        # (tq, dp)
        k = k_ref[0]                        # (tk, dp)
        return lax.dot_general(q, k, (((1,), (1,)), ((), ())),
                               preferred_element_type=jnp.float32)   # (tq, tk)

    def _online_softmax_update(s):
        v = v_ref[0]                        # (tk, dp)
        m_prev = m_scr[...]
        m_new = jnp.maximum(m_prev, jnp.max(s, axis=-1, keepdims=True))
        alpha = jnp.exp(m_prev - m_new)
        p = jnp.exp(s - m_new)
        l_scr[...] = alpha * l_scr[...] + jnp.sum(p, axis=-1, keepdims=True)
        acc_scr[...] = alpha * acc_scr[...] + jnp.dot(
            p.astype(v.dtype), v, preferred_element_type=jnp.float32)
        m_scr[...] = m_new

    # torch.tril(..., diagonal=1): keep col <= row + 1.  Per-tile classification:
    #   fully masked  : min col >  max row + 1  ->  ki*tk      >  qi*tq + tq  (skip)
    #   fully visible : max col <= min row + 1  ->  ki*tk + tk <= qi*tq + 2
    #   straddles diag: needed but not fully visible -> apply the mask
    needs_compute = ki * tk <= qi * tq + tq
    fully_visible = ki * tk + tk <= qi * tq + 2

    @pl.when(needs_compute & jnp.logical_not(fully_visible))
    def _diag_tile():
        s = _scores()
        row = qi * tq + lax.broadcasted_iota(jnp.int32, (tq, tk), 0)
        col = ki * tk + lax.broadcasted_iota(jnp.int32, (tq, tk), 1)
        s = jnp.where(col <= row + 1, s, MASK_VALUE)
        _online_softmax_update(s)

    @pl.when(fully_visible)
    def _interior_tile():
        _online_softmax_update(_scores())

    @pl.when(ki == pl.num_programs(2) - 1)
    def _finalize():
        inv_l = pl.reciprocal(l_scr[...], approx=approx_recip)
        o_ref[0] = (acc_scr[...] * inv_l).astype(o_ref.dtype)


# --------------------------------------------------------------------------- #
# Wrapper
# --------------------------------------------------------------------------- #
def causal_attention(x, w_q, w_k, w_v, *, compute_dtype=jnp.bfloat16,
                     block_q=512, block_k=512):
    """Single-head causal attention matching the PyTorch CausalAttention forward.

    x:   [B, T, d_in];  w_*: [d_out, d_in] (torch nn.Linear layout, no bias).
    Returns [B, T, d_out] in x.dtype.  Dropout is eval-mode (identity).
    block_q/block_k defaults (512/512) sit at/above the HBM ridge on v5e/v7x;
    on v6e block_q=1024 may be slightly better for long sequences.
    """
    B, T, d_in = x.shape
    d_out = w_q.shape[0]
    dp = ((d_out + 127) // 128) * 128          # lane-dense padded head dim
    scale = 1.0 / math.sqrt(float(d_out))      # torch divides scores by d_out**0.5

    def _prep(w, s):
        wt = jnp.asarray(w, jnp.float32).T * s            # (d_in, d_out)
        if dp != d_out:
            wt = jnp.pad(wt, ((0, 0), (0, dp - d_out)))   # zero-pad to lane width
        return wt

    # Fused lane-dense QKV weight (d_in, 3*dp); softmax scale folded into Q columns.
    w_qkv = jnp.concatenate(
        [_prep(w_q, scale), _prep(w_k, 1.0), _prep(w_v, 1.0)], axis=1
    ).astype(compute_dtype)

    cdt_isz = jnp.dtype(compute_dtype).itemsize
    x_isz = x.dtype.itemsize

    # ---- 1) fused QKV projection: qkv[B, T, 3*dp] = x @ W_qkv -----------------
    tb = _pick_block(T, 512)
    qkv = pl.pallas_call(
        _qkv_proj_kernel,
        out_shape=jax.ShapeDtypeStruct((B, T, 3 * dp), compute_dtype),
        grid_spec=pltpu.PrefetchScalarGridSpec(
            num_scalar_prefetch=0,
            grid=(B, T // tb),
            in_specs=[
                pl.BlockSpec((1, tb, d_in), lambda b, t: (b, t, 0)),
                # Grid-invariant weight (constant index_map -> fetched once).
                # TODO(synk): on v7x consider pipeline_mode=pl.Buffered(1) for this
                # invariant block to save VMEM under the 64 MiB budget.
                pl.BlockSpec((d_in, 3 * dp), lambda b, t: (0, 0)),
            ],
            out_specs=pl.BlockSpec((1, tb, 3 * dp), lambda b, t: (b, t, 0)),
        ),
        compiler_params=pltpu.CompilerParams(
            dimension_semantics=("parallel", "parallel"),
            vmem_limit_bytes=32 * 1024 * 1024,
        ),
        cost_estimate=pl.CostEstimate(
            flops=2 * B * T * d_in * 3 * dp,
            transcendentals=0,
            bytes_accessed=(B * T * d_in * x_isz            # x (native dtype)
                            + d_in * 3 * dp * cdt_isz       # weight
                            + B * T * 3 * dp * cdt_isz),    # qkv out
        ),
    )(x, w_qkv)

    # ---- 2) flash-style causal attention over (q-block, kv-block) tiles -------
    if B == 1:
        # Keep >= 2 q-blocks so both v7x TensorCores get work on the parallel axes.
        block_q = min(block_q, max(T // 2, 8))
    tq = _pick_block(T, block_q)
    tk = _pick_block(T, block_k)
    nq, nk = T // tq, T // tk

    # Clamp the kv block index to the last causally-needed block: fully-masked
    # iterations map to an already-resident block, so the pipeline skips the DMA.
    def _kv_block(qi, ki):
        return jnp.minimum(ki, (qi * tq + tq) // tk)

    kernel = functools.partial(
        _flash_attn_kernel, tq=tq, tk=tk,
        approx_recip=(jnp.dtype(compute_dtype) != jnp.dtype(jnp.float32)))

    out = pl.pallas_call(
        kernel,
        out_shape=jax.ShapeDtypeStruct((B, T, dp), x.dtype),
        grid_spec=pltpu.PrefetchScalarGridSpec(
            num_scalar_prefetch=0,
            grid=(B, nq, nk),
            in_specs=[
                # Q / K / V slabs are slices of the fused qkv array along its last dim.
                pl.BlockSpec((1, tq, dp), lambda b, qi, ki: (b, qi, 0)),             # Q
                pl.BlockSpec((1, tk, dp), lambda b, qi, ki: (b, _kv_block(qi, ki), 1)),  # K
                pl.BlockSpec((1, tk, dp), lambda b, qi, ki: (b, _kv_block(qi, ki), 2)),  # V
            ],
            out_specs=pl.BlockSpec((1, tq, dp), lambda b, qi, ki: (b, qi, 0)),
            scratch_shapes=[
                pltpu.VMEM((tq, 1), jnp.float32),    # running max
                pltpu.VMEM((tq, 1), jnp.float32),    # running sum
                pltpu.VMEM((tq, dp), jnp.float32),   # output accumulator
            ],
        ),
        compiler_params=pltpu.CompilerParams(
            # batch + q-block axes shard across TensorCores (v7x megacore);
            # the kv axis carries the online-softmax accumulator -> arbitrary.
            dimension_semantics=("parallel", "parallel", "arbitrary"),
            vmem_limit_bytes=32 * 1024 * 1024,
        ),
        cost_estimate=pl.CostEstimate(
            # QK^T + PV, roughly halved by the causal skip.
            flops=2 * B * T * T * dp,
            transcendentals=(B * T * T) // 2,
            bytes_accessed=(B * T * dp * cdt_isz                              # Q
                            + B * T * 2 * dp * cdt_isz * max(nq // 2, 1)      # K/V re-reads (~nq/2 causal)
                            + B * T * dp * x_isz),                            # output
        ),
    )(qkv, qkv, qkv)

    if dp != d_out:
        out = out[..., :d_out]
    return out


def causal_attention_ref(x, w_q, w_k, w_v):
    """Pure-JAX reference mirroring the PyTorch forward (eval-mode dropout)."""
    d_out = w_q.shape[0]
    q = x @ w_q.T
    k = x @ w_k.T
    v = x @ w_v.T
    scores = jnp.einsum("btd,bsd->bts", q, k)
    t = x.shape[1]
    keep = jnp.tril(jnp.ones((t, t), dtype=bool), k=1)   # diagonal=1 as in the module
    scores = jnp.where(keep[None], scores, -jnp.inf)
    attn = jax.nn.softmax(scores / math.sqrt(float(d_out)), axis=-1)
    return jnp.einsum("bts,bsd->btd", attn, v)


if __name__ == "__main__":
    # Small shapes consistent with the module: batch=2, seq=8, d_in=32, d_out=32.
    B, T, D_IN, D_OUT = 2, 8, 32, 32

    key = jax.random.PRNGKey(0)
    kx, kq, kk, kv = jax.random.split(key, 4)

    x = jax.random.normal(kx, (B, T, D_IN), dtype=jnp.float32)

    # Deterministic params (same range as torch Linear default: U(-1/sqrt(d_in), 1/sqrt(d_in))).
    bound = 1.0 / math.sqrt(D_IN)
    w_q = jax.random.uniform(kq, (D_OUT, D_IN), jnp.float32, -bound, bound)
    w_k = jax.random.uniform(kk, (D_OUT, D_IN), jnp.float32, -bound, bound)
    w_v = jax.random.uniform(kv, (D_OUT, D_IN), jnp.float32, -bound, bound)

    ref = causal_attention_ref(x, w_q, w_k, w_v)

    # Default perf config: bf16 MXU operands, f32 accumulation -> relaxed tolerance.
    out = jax.block_until_ready(causal_attention(x, w_q, w_k, w_v))
    assert out.shape == (B, T, D_OUT), out.shape
    max_err = float(jnp.max(jnp.abs(out - ref)))
    assert jnp.allclose(out, ref, atol=5e-2, rtol=5e-2), max_err

    print("KERNEL_OK")
</pallas_src>

<mosaic_0001>
module attributes {stable_mosaic.version = 11 : i64} {
  func.func @_qkv_proj_kernel(%arg0: i32, %arg1: i32, %arg2: memref<1x8x32xf32, #tpu.memory_space<vmem>>, %arg3: memref<32x384xbf16, #tpu.memory_space<vmem>>, %arg4: memref<1x8x384xbf16, #tpu.memory_space<vmem>>) attributes {dimension_semantics = [#tpu.dimension_semantics<parallel>, #tpu.dimension_semantics<parallel>], iteration_bounds = array<i64: 2, 1>, scalar_prefetch = 0 : i64, scratch_operands = 0 : i64, tpu.core_type = #tpu.core_type<tc>, window_params = [{transform_indices = @transform_0, window_bounds = array<i64: 1, 8, 32>}, {pipeline_mode = #tpu.pipeline_mode<synchronous>, transform_indices = @transform_1, window_bounds = array<i64: 32, 384>}, {transform_indices = @transform_2, window_bounds = array<i64: 1, 8, 384>}]} {
    %c0 = arith.constant 0 : index
    %c0_0 = arith.constant 0 : index
    %c0_1 = arith.constant 0 : index
    %0 = vector.load %arg2[%c0, %c0_0, %c0_1] : memref<1x8x32xf32, #tpu.memory_space<vmem>>, vector<1x8x32xf32>
    %1 = vector.shape_cast %0 : vector<1x8x32xf32> to vector<8x32xf32>
    %2 = arith.truncf %1 : vector<8x32xf32> to vector<8x32xbf16>
    %c0_2 = arith.constant 0 : index
    %c0_3 = arith.constant 0 : index
    %3 = vector.load %arg3[%c0_2, %c0_3] : memref<32x384xbf16, #tpu.memory_space<vmem>>, vector<32x384xbf16>
    %cst = arith.constant dense<0.000000e+00> : vector<8x384xf32>
    %4 = tpu.matmul %2, %3, %cst {dimension_numbers = #tpu.dot_dimension_numbers<[1], [0], [0], [1], [0, 0, 1, 1], [], []>} : vector<8x32xbf16>, vector<32x384xbf16>, vector<8x384xf32> -> vector<8x384xf32>
    %5 = arith.truncf %4 : vector<8x384xf32> to vector<8x384xbf16>
    %c0_4 = arith.constant 0 : index
    %c0_5 = arith.constant 0 : index
    %c0_6 = arith.constant 0 : index
    %6 = vector.load %arg4[%c0_4, %c0_5, %c0_6] : memref<1x8x384xbf16, #tpu.memory_space<vmem>>, vector<1x8x384xbf16>
    %7 = vector.shape_cast %6 : vector<1x8x384xbf16> to vector<8x384xbf16>
    %8 = vector.shape_cast %5 : vector<8x384xbf16> to vector<1x8x384xbf16>
    tpu.vector_store %arg4[%c0_4, %c0_5, %c0_6], %8 {strides = array<i32>} : memref<1x8x384xbf16, #tpu.memory_space<vmem>>, vector<1x8x384xbf16>,
    return
  }
  func.func @transform_0(%arg0: i32, %arg1: i32) -> (i32, i32, i32) {
    %c0_i32 = arith.constant 0 : i32
    %c0_i32_0 = arith.constant 0 : i32
    return %arg0, %arg1, %c0_i32 : i32, i32, i32
  }
  func.func @transform_1(%arg0: i32, %arg1: i32) -> (i32, i32) {
    %c0_i32 = arith.constant 0 : i32
    %c0_i32_0 = arith.constant 0 : i32
    %c0_i32_1 = arith.constant 0 : i32
    return %c0_i32, %c0_i32_0 : i32, i32
  }
  func.func @transform_2(%arg0: i32, %arg1: i32) -> (i32, i32, i32) {
    %c0_i32 = arith.constant 0 : i32
    %c0_i32_0 = arith.constant 0 : i32
    return %arg0, %arg1, %c0_i32 : i32, i32, i32
  }
}

</mosaic_0001>

<llo_original>
// kernel: tpu_custom_call.1
$region0: #{tpu_custom_call.1}
  #allocation0 [shape = 'u32[]', space=smem, size = 0x4, offset = 0x4, fixed_abs, tag = 'smem constant byte address 0x4 - core index']
  #allocation1 [shape = 'u32[144,128]{1,0:T(1,128)}', space=vmem, size = 0x12000, scoped, tag = 'internal scratch']
  %s0 = inlined_call_operand.hbm [shape: f32[2,8,32], index: 0, kind: input, shape index: {}]
  %s1 = inlined_call_operand.hbm [shape: bf16[32,384], index: 1, kind: input, shape index: {}]
  %s2 = inlined_call_operand.hbm [shape: bf16[2,8,384], index: 2, kind: output, shape index: {}]
  %s3 = sld [smem:[#allocation0]]
  $region49: #{tpu_custom_call.1} parent=0
    _
  %s5 = ssub.s32 1, %s3
  %s6 = scalar_select 0, %s5, %s3
  $region1: #{tpu_custom_call.1} parent=0
    #allocation2 [shape = 'u8[8192]{0}', space=vmem, size = 0x2000, scoped, tag = 'input window, operand 0']
    #allocation3 [shape = 's32[2]{0}', space=sflag, size = 0x8, scoped, tag = 'scoped memory for tpu_custom_call.1']
    #allocation4 [shape = 's32[2]{0}', space=sflag, size = 0x8, scoped, tag = 'scoped memory for tpu_custom_call.1']
    #allocation5 [shape = 'u8[24576]{0}', space=vmem, size = 0x6000, scoped, tag = 'input window, operand 1, single buffered']
    #allocation6 [shape = 's32[1]{0}', space=sflag, size = 0x4, scoped, tag = 'scoped memory for tpu_custom_call.1']
    #allocation7 [shape = 'u8[12288]{0}', space=vmem, size = 0x3000, scoped, tag = 'output window, operand 0']
    %7 = vsyncpa [#allocation3], 0
    %s8 = scalar_lea.sflag [#allocation3], 1
    %9 = vsyncpa %s8, 0
    %10 = vsyncpa [#allocation6], 0
    %11 = vsyncpa [#allocation4], 0
    %s12 = scalar_lea.sflag [#allocation4], 1
    %13 = vsyncpa %s12, 0
    loop: start=0, step=1, limit=4
    $region2: #{tpu_custom_call.1} parent=1 // loop_pre_header
      _
    $region3: #{tpu_custom_call.1} parent=1 // loop_header
      %s15 = sphi 0, %s19
      %p16 = scmp.ge.s32.totalorder %s15, 4
      %s22 = sphi 0, %s34
      %s23 = sphi 0, %s30
      %s24 = sphi 0, %s22
      %s25 = sphi 0, %s23
      %s26 = sphi 0, %s24
      %s27 = sphi 0, %s25
      %s39 = sphi 0, %s41
      %s42 = sphi 0, %s39
      %s43 = sphi 0, %s42
      %s59 = sphi 0, %s43
      %s63 = sphi 0, %s63
      %s65 = sphi 0, %s63
      %s66 = sphi 0, %s65
      %s80 = sphi 0, %s66
      %s88 = sphi 0, %s90
      %s91 = sphi 0, %s88
      %s92 = sphi 0, %s91
      %s108 = sphi 0, %s92
    $region4: #{tpu_custom_call.1} parent=1 // loop_header_branch
      %18 = sbr.rel (%p16) target = $region8
    $region5: #{tpu_custom_call.1} parent=1 // loop_body
      %s20 = ssub.s32 %s15, 1
      %s21 = ssub.s32 %s15, 2
      %s28 = sadd.s32 1, %s23
      %p29 = scmp.ge.s32.totalorder %s28, 1
      %s30 = scalar_select %p29, 0, %s28
      %s31 = sadd.s32 1, %s22
      %s32 = scalar_select %p29, %s31, %s22
      %p33 = scmp.ge.s32.totalorder %s32, 2
      %s34 = scalar_select %p33, 0, %s32
      %s35 = ssub.s32 %s22, %s34
      %s36 = ssub.s32 %s23, %s30
      %s37 = sor.u32 %s35, %s36
      %p38 = scmp.eq.s32.totalorder %s37, 0
      %s40 = sadd.s32 %s39, 1
      %s41 = scalar_select %p38, %s39, %s40
      %p44 = pneg %p38
      %p45 = scmp.eq.s32.totalorder %s15, 1
      %p46 = por %p44, %p45
      %p47 = scmp.ne.s32.totalorder %s39, %s42
      %p48 = scmp.eq.s32.totalorder %s15, 0
      %p49 = por %p47, %p48
      %p50 = scmp.ne.s32.totalorder %s39, %s42
      %p51 = scmp.eq.s32.totalorder %s20, 1
      %p52 = por %p50, %p51
      %p53 = scmp.ne.s32.totalorder %s42, %s43
      %p54 = scmp.eq.s32.totalorder %s20, 0
      %p55 = por %p53, %p54
      %p56 = scmp.ne.s32.totalorder %s42, %s43
      %p57 = scmp.eq.s32.totalorder %s21, 1
      %p58 = por %p56, %p57
      %p60 = scmp.ne.s32.totalorder %s43, %s59
      %p61 = scmp.eq.s32.totalorder %s21, 0
      %p62 = por %p60, %p61
      %s64 = sadd.s32 %s63, 1
      %p67 = scmp.eq.s32.totalorder %s15, 1
      %p68 = scmp.ne.s32.totalorder %s63, %s65
      %p69 = scmp.eq.s32.totalorder %s15, 0
      %p70 = por %p68, %p69
      %p71 = scmp.ne.s32.totalorder %s63, %s65
      %p72 = scmp.eq.s32.totalorder %s20, 1
      %p73 = por %p71, %p72
      %p74 = scmp.ne.s32.totalorder %s65, %s66
      %p75 = scmp.eq.s32.totalorder %s20, 0
      %p76 = por %p74, %p75
      %p77 = scmp.ne.s32.totalorder %s65, %s66
      %p78 = scmp.eq.s32.totalorder %s21, 1
      %p79 = por %p77, %p78
      %p81 = scmp.ne.s32.totalorder %s66, %s80
      %p82 = scmp.eq.s32.totalorder %s21, 0
      %p83 = por %p81, %p82
      %s84 = ssub.s32 %s22, %s34
      %s85 = ssub.s32 %s23, %s30
      %s86 = sor.u32 %s84, %s85
      %p87 = scmp.eq.s32.totalorder %s86, 0
      %s89 = sadd.s32 %s88, 1
      %s90 = scalar_select %p87, %s88, %s89
      %p93 = pneg %p87
      %p94 = scmp.eq.s32.totalorder %s15, 1
      %p95 = por %p93, %p94
      %p96 = scmp.ne.s32.totalorder %s88, %s91
      %p97 = scmp.eq.s32.totalorder %s15, 0
      %p98 = por %p96, %p97
      %p99 = scmp.ne.s32.totalorder %s88, %s91
      %p100 = scmp.eq.s32.totalorder %s20, 1
      %p101 = por %p99, %p100
      %p102 = scmp.ne.s32.totalorder %s91, %s92
      %p103 = scmp.eq.s32.totalorder %s20, 0
      %p104 = por %p102, %p103
      %p105 = scmp.ne.s32.totalorder %s91, %s92
      %p106 = scmp.eq.s32.totalorder %s21, 1
      %p107 = por %p105, %p106
      %p109 = scmp.ne.s32.totalorder %s92, %s108
      %p110 = scmp.eq.s32.totalorder %s21, 0
      %p111 = por %p109, %p110
      %p112 = scmp.le.s32.totalorder 1, %s15
      %p113 = scmp.lt.s32.totalorder %s15, 3
      %p114 = pnand %p112, %p113
      %p115 = pneg %p114
      // Predicated region
      $region9: #{tpu_custom_call.1} parent=5 // pred_check
        _
      $region10: #{tpu_custom_call.1} parent=5 // pred_check_branch
        %117 = sbr.rel (%p114) target = $region12
      $region11: #{tpu_custom_call.1} parent=5 // pred_region
        %s118 = ssub.s32 %s15, 1
        // Predicated region
        $region13: #{tpu_custom_call.1} parent=11 // pred_check
          %p119 = pneg %p76
        $region14: #{tpu_custom_call.1} parent=11 // pred_check_branch
          %121 = sbr.rel (%p119) target = $region16
        $region15: #{tpu_custom_call.1} parent=11 // pred_region
          %s123 = ssub.s32 768, 768
          %124 = vsyncadd [#allocation6], %s123
          %s125 = sshll.u32 [#allocation5], 4
          %s126 = int_to_ptr.vmem [resolvable:$true] %s125
          %131 = dma.hbm_to_vmem [thread:$0]  %s1, 768, %s126, [#allocation6], 192, 192, 12
        $region16: #{tpu_custom_call.1} parent=11 // pred_fallthru
          _
      $region12: #{tpu_custom_call.1} parent=5 // pred_fallthru
        _
      %p132 = scmp.lt.s32.totalorder %s15, 2
      // Predicated region
      $region17: #{tpu_custom_call.1} parent=5 // pred_check
        %p133 = pneg %p132
      $region18: #{tpu_custom_call.1} parent=5 // pred_check_branch
        %135 = sbr.rel (%p133) target = $region20
      $region19: #{tpu_custom_call.1} parent=5 // pred_region
        // Predicated region
        $region21: #{tpu_custom_call.1} parent=19 // pred_check
          %p136 = pneg %p49
        $region22: #{tpu_custom_call.1} parent=19 // pred_check_branch
          %138 = sbr.rel (%p136) target = $region24
        $region23: #{tpu_custom_call.1} parent=19 // pred_region
          %s139 = sand.u32 %s39, 1
          %s140 = scalar_lea.sflag [#allocation3], %s139
          %s141 = sand.u32 %s39, 1
          %s142 = smul.addr %s141, 8
          %s143 = scalar_lea.vmem [#allocation2], %s142
          %s145 = ssub.s32 128, 128
          %146 = vsyncadd %s140, %s145
          %s147 = sadd.s32 %s23, %s22
          %s148 = smul.addr %s147, 128
          %s149 = scalar_lea.hbm %s0, %s148
          %s151 = sshll.u32 %s143, 4
          %s152 = int_to_ptr.vmem [resolvable:$true] %s151
          %154 = dma.hbm_to_vmem [thread:$0]  %s149, 128, %s152, %s140
        $region24: #{tpu_custom_call.1} parent=19 // pred_fallthru
          _
      $region20: #{tpu_custom_call.1} parent=5 // pred_fallthru
        _
      %p155 = scmp.le.s32.totalorder 1, %s15
      %p156 = scmp.lt.s32.totalorder %s15, 3
      %p157 = pnand %p155, %p156
      %p158 = pneg %p157
      // Predicated region
      $region25: #{tpu_custom_call.1} parent=5 // pred_check
        _
      $region26: #{tpu_custom_call.1} parent=5 // pred_check_branch
        %160 = sbr.rel (%p157) target = $region28
      $region27: #{tpu_custom_call.1} parent=5 // pred_region
        %s161 = ssub.s32 %s15, 1
        %s162 = sand.u32 %s42, 1
        %s163 = scalar_lea.sflag [#allocation3], %s162
        %s164 = sand.u32 %s42, 1
        %s165 = smul.addr %s164, 8
        %s166 = scalar_lea.vmem [#allocation2], %s165
        // Predicated region
        $region29: #{tpu_custom_call.1} parent=27 // pred_check
          %p167 = pneg %p55
        $region30: #{tpu_custom_call.1} parent=27 // pred_check_branch
          %169 = sbr.rel (%p167) target = $region32
        $region31: #{tpu_custom_call.1} parent=27 // pred_region
          %170 = dma.done %s163, 128
        $region32: #{tpu_custom_call.1} parent=27 // pred_fallthru
          _
        // Predicated region
        $region33: #{tpu_custom_call.1} parent=27 // pred_check
          %p171 = pneg %p76
        $region34: #{tpu_custom_call.1} parent=27 // pred_check_branch
          %173 = sbr.rel (%p171) target = $region36
        $region35: #{tpu_custom_call.1} parent=27 // pred_region
          %174 = dma.done [#allocation6], 768
        $region36: #{tpu_custom_call.1} parent=27 // pred_fallthru
          _
        %s175 = sand.u32 %s42, 1
        %s176 = scalar_lea.sflag [#allocation3], %s175
        %s177 = sand.u32 %s42, 1
        %s178 = smul.addr %s177, 8
        %s179 = scalar_lea.vmem [#allocation2], %s178
        %p180 = pneg %p55
        %p181 = pneg %p52
        %p182 = pneg %p76
        %p183 = pneg %p73
        %p184 = pneg %p104
        %p185 = pneg %p101
        %s186 = sand.u32 %s91, 1
        %s187 = scalar_lea.sflag [#allocation4], %s186
        %s188 = sand.u32 %s91, 1
        %s189 = smul.addr %s188, 12
        %s190 = scalar_lea.vmem [#allocation7], %s189
        %v192 = vld [vmem:[%s166] sm:$0xff]
        %v193 = vpack.c.bf16 %v192, %v192
        %v194 = vld [vmem:[#allocation5] sm:$0xff]
        %v195 = vld [vmem:[#allocation5 + $0x8] sm:$0xf]
        %v196 = vld [vmem:[#allocation5 + $0xc] sm:$0xff]
        %v197 = vld [vmem:[#allocation5 + $0x14] sm:$0xf]
        %v198 = vld [vmem:[#allocation5 + $0x18] sm:$0xff]
        %v199 = vld [vmem:[#allocation5 + $0x20] sm:$0xf]
        %v200 = vld [vmem:[#allocation5 + $0x24] sm:$0xff]
        %v201 = vld [vmem:[#allocation5 + $0x2c] sm:$0xf]
        %v210 = vunpack.c.l.b16 %v194
        %v211 = vunpack.c.h.b16 %v194
        %v212 = vunpack.c.l.b16 %v195
        %v213 = vunpack.c.l.b16 %v196
        %v214 = vunpack.c.h.b16 %v196
        %v215 = vunpack.c.l.b16 %v197
        %v216 = vunpack.c.l.b16 %v198
        %v217 = vunpack.c.h.b16 %v198
        %v218 = vunpack.c.l.b16 %v199
        %v219 = vunpack.c.l.b16 %v200
        %v220 = vunpack.c.h.b16 %v200
        %v221 = vunpack.c.l.b16 %v201
        %v222 = vpack.c.b16 %v213, %v210
        %v223 = vpack.c.b16 %v214, %v211
        %v224 = vpack.c.b16 %v215, %v212
        %v225 = vpack.c.b16 %v219, %v216
        %v226 = vpack.c.b16 %v220, %v217
        %v227 = vpack.c.b16 %v221, %v218
        %vm234 = vcmask 261120
        %v236 = vsel %vm234, %v193, 0
        %238 = vmatprep.subr.bf16.mxu0 %v223
        %239 = vmatpush1.bf16.msra.mxu0 %v222
        %240 = vmatprep.subr.bf16.mxu0 %v226
        %241 = vmatpush1.bf16.msra.mxu0 %v225
        %242 = vmatprep.subr.bf16.mxu0 0
        %243 = vmatpush1.bf16.msra.mxu0 0
        %244 = vmatprep.subr.bf16.mxu0 0
        %245 = vmatpush1.bf16.msra.mxu0 0
        %246 = vmatprep.subr.bf16.mxu0 0
        %247 = vmatpush1.bf16.msra.mxu0 0
        %248 = vmatprep.subr.bf16.mxu0 0
        %249 = vmatpush1.bf16.msra.mxu0 0
        %250 = vmatprep.subr.bf16.mxu0 0
        %251 = vmatpush1.bf16.msra.mxu0 0
        %252 = vmatprep.subr.bf16.mxu0 0
        %253 = vmatpush1.bf16.msra.mxu0 0
        %254 = vmatprep.subr.bf16.mxu0 0
        %255 = vmatpush1.bf16.msra.mxu0 0
        %256 = vmatprep.subr.bf16.mxu0 0
        %257 = vmatpush1.bf16.msra.mxu0 0
        %258 = vmatprep.subr.bf16.mxu0 0
        %259 = vmatpush1.bf16.msra.mxu0 0
        %260 = vmatprep.subr.bf16.mxu0 0
        %261 = vmatpush1.bf16.msra.mxu0 0
        %262 = vmatprep.subr.bf16.mxu0 0
        %263 = vmatpush1.bf16.msra.mxu0 0
        %264 = vmatprep.subr.bf16.mxu0 0
        %265 = vmatpush1.bf16.msra.mxu0 0
        %266 = vmatprep.subr.bf16.mxu0 0
        %267 = vmatpush1.bf16.msra.mxu0 0
        %268 = vmatprep.subr.bf16.mxu0 0
        %269 = vmatpush1.bf16.msra.mxu0 0
        %270 = vmatprep.mubr.bf16.mxu0 0
        %271 = vmatmul.mubr.bf16.gmra.mrb[0].mxu0 %v236
        %v272 = vpop.f32.mrb[0].mxu0
        %v273 = vadd.f32 0.0, %v272
        %v274 = vpop.f32.mrb[0].mxu0
        %v275 = vadd.f32 0.0, %v274
        %v276 = vpop.f32.mrb[0].mxu0
        %v277 = vpop.f32.mrb[0].mxu0
        %278 = vdwg.mxu0
        %279 = vmatprep.subr.bf16.mxu0 0
        %280 = vmatpush1.bf16.msra.mxu0 %v224
        %281 = vmatprep.subr.bf16.mxu0 0
        %282 = vmatpush1.bf16.msra.mxu0 %v227
        %283 = vmatprep.subr.bf16.mxu0 0
        %284 = vmatpush1.bf16.msra.mxu0 0
        %285 = vmatprep.subr.bf16.mxu0 0
        %286 = vmatpush1.bf16.msra.mxu0 0
        %287 = vmatprep.subr.bf16.mxu0 0
        %288 = vmatpush1.bf16.msra.mxu0 0
        %289 = vmatprep.subr.bf16.mxu0 0
        %290 = vmatpush1.bf16.msra.mxu0 0
        %291 = vmatprep.subr.bf16.mxu0 0
        %292 = vmatpush1.bf16.msra.mxu0 0
        %293 = vmatprep.subr.bf16.mxu0 0
        %294 = vmatpush1.bf16.msra.mxu0 0
        %295 = vmatprep.subr.bf16.mxu0 0
        %296 = vmatpush1.bf16.msra.mxu0 0
        %297 = vmatprep.subr.bf16.mxu0 0
        %298 = vmatpush1.bf16.msra.mxu0 0
        %299 = vmatprep.subr.bf16.mxu0 0
        %300 = vmatpush1.bf16.msra.mxu0 0
        %301 = vmatprep.subr.bf16.mxu0 0
        %302 = vmatpush1.bf16.msra.mxu0 0
        %303 = vmatprep.subr.bf16.mxu0 0
        %304 = vmatpush1.bf16.msra.mxu0 0
        %305 = vmatprep.subr.bf16.mxu0 0
        %306 = vmatpush1.bf16.msra.mxu0 0
        %307 = vmatprep.subr.bf16.mxu0 0
        %308 = vmatpush1.bf16.msra.mxu0 0
        %309 = vmatprep.subr.bf16.mxu0 0
        %310 = vmatpush1.bf16.msra.mxu0 0
        %311 = vmatprep.mubr.bf16.mxu0 0
        %312 = vmatmul.mubr.bf16.gmra.mrb[0].mxu0 %v236
        %v313 = vpop.f32.mrb[0].mxu0
        %v314 = vadd.f32 0.0, %v313
        %v315 = vpop.f32.mrb[0].mxu0
        %v316 = vpop.f32.mrb[0].mxu0
        %v317 = vpop.f32.mrb[0].mxu0
        %318 = vdwg.mxu0
        %v319 = vpack.c.bf16 %v273, %v273
        %v320 = vpack.c.bf16 %v275, %v275
        %v321 = vpack.c.bf16 %v314, %v314
        %v325 = vunpack.c.l.b16 %v319
        %v326 = vunpack.c.l.b16 %v320
        %v327 = vunpack.c.l.b16 %v321
        %v328 = vpack.c.b16 %v326, %v325
        %v329 = vpack.c.b16 %v327, %v327
        %332 = vst [vmem:[%s190] sm:$0xff] %v328
        %333 = vst [vmem:[%s190 + $0x8] sm:$0xf] %v329
        %s334 = sand.u32 %s91, 1
        %s335 = scalar_lea.sflag [#allocation4], %s334
        %s336 = sand.u32 %s91, 1
        %s337 = smul.addr %s336, 12
        %s338 = scalar_lea.vmem [#allocation7], %s337
        // Predicated region
        $region37: #{tpu_custom_call.1} parent=27 // pred_check
          %p339 = pneg %p101
        $region38: #{tpu_custom_call.1} parent=27 // pred_check_branch
          %341 = sbr.rel (%p339) target = $region40
        $region39: #{tpu_custom_call.1} parent=27 // pred_region
          %s343 = ssub.s32 192, 192
          %344 = vsyncadd %s335, %s343
          %s345 = smul.addr %s25, 3
          %s346 = smul.addr %s24, 3
          %s347 = sadd.s32 %s345, %s346
          %s348 = smul.addr %s347, 64
          %s349 = scalar_lea.hbm %s2, %s348
          %s351 = sshll.u32 %s338, 4
          %s352 = int_to_ptr.vmem [resolvable:$true] %s351
          %354 = dma.vmem_to_hbm [thread:$0]  %s352, 192, %s349, %s335
        $region40: #{tpu_custom_call.1} parent=27 // pred_fallthru
          _
      $region28: #{tpu_custom_call.1} parent=5 // pred_fallthru
        _
      %p355 = scmp.le.s32.totalorder 2, %s15
      // Predicated region
      $region41: #{tpu_custom_call.1} parent=5 // pred_check
        %p356 = pneg %p355
      $region42: #{tpu_custom_call.1} parent=5 // pred_check_branch
        %358 = sbr.rel (%p356) target = $region44
      $region43: #{tpu_custom_call.1} parent=5 // pred_region
        %s359 = ssub.s32 %s15, 2
        // Predicated region
        $region45: #{tpu_custom_call.1} parent=43 // pred_check
          %p360 = pneg %p107
        $region46: #{tpu_custom_call.1} parent=43 // pred_check_branch
          %362 = sbr.rel (%p360) target = $region48
        $region47: #{tpu_custom_call.1} parent=43 // pred_region
          %s363 = sand.u32 %s92, 1
          %s364 = scalar_lea.sflag [#allocation4], %s363
          %s365 = sand.u32 %s92, 1
          %s366 = smul.addr %s365, 12
          %s367 = scalar_lea.vmem [#allocation7], %s366
          %368 = dma.done %s364, 192
        $region48: #{tpu_custom_call.1} parent=43 // pred_fallthru
          _
      $region44: #{tpu_custom_call.1} parent=5 // pred_fallthru
        _
    $region6: #{tpu_custom_call.1} parent=1 // loop_footer
      %s19 = sadd.s32 1, %s15
    $region7: #{tpu_custom_call.1} parent=1 // loop_footer_branch
      %14 = sbr.rel target = $region3
    $region8: #{tpu_custom_call.1} parent=1 // loop_exit
      _
    %369 = vsyncpa [#allocation3], 1
    %s370 = scalar_lea.sflag [#allocation3], 1
    %371 = vsyncpa %s370, 1
    %372 = vsyncpa [#allocation6], 1
    %373 = vsyncpa [#allocation4], 1
    %s374 = scalar_lea.sflag [#allocation4], 1
    %375 = vsyncpa %s374, 1

</llo_original>
